<compile_context>
chip_gen: v7x
topology: tpu7x:2x2x1
jax: 0.10.0
libtpu: 0.0.40
codegen_flags: <defaults>
</compile_context>

<pallas_src>
import functools

import jax
import jax.numpy as jnp
import numpy as np
from jax.experimental import pallas as pl
from jax.experimental.pallas import tpu as pltpu


# ---------------------------------------------------------------------------
# Pass 1: GroupNorm statistics (tiled reduction over the spatial axis).
# ---------------------------------------------------------------------------
def _group_stats_kernel(x_ref, s1_ref, s2_ref):
    # x_ref : (1, C, s_tile) f32 block of the flattened input.
    # s1/s2 : (1, C, 1) accumulators (same block revisited across the t axis).
    x = x_ref[0]                                    # (C, s_tile)
    s1 = jnp.sum(x, axis=1, keepdims=True)          # (C, 1)
    s2 = jnp.sum(x * x, axis=1, keepdims=True)      # (C, 1)

    @pl.when(pl.program_id(1) == 0)
    def _init():
        s1_ref[0] = s1
        s2_ref[0] = s2

    @pl.when(pl.program_id(1) != 0)
    def _accumulate():
        s1_ref[0] = s1_ref[0] + s1
        s2_ref[0] = s2_ref[0] + s2


# ---------------------------------------------------------------------------
# Pass 2: folded GroupNorm affine + LeakyReLU + 3x3x3 conv (stacked matmul).
# ---------------------------------------------------------------------------
def _norm_conv_kernel(x_ref, scale_ref, bias_ref, w_ref, o_ref, rhs_ref, *,
                      negative_slope, hw_shape, d_tile, depth, conv_dtype):
    # x_ref    : (1, 1, C, (d_tile+2)*H*W) halo'd depth tile (f32)
    # scale_ref: (1, C, 1)   folded GroupNorm scale  (gamma * inv_std)
    # bias_ref : (1, C, 1)   folded GroupNorm bias   (beta - mean * scale)
    # w_ref    : (C, 27*C)   conv weights, tap-major ((kd*3+kh)*3+kw)*C + ci
    # o_ref    : (1, C, d_tile*H*W) output block (lane-dense, multiple of 128)
    # rhs_ref  : (27*C, d_tile*H*W) VMEM scratch for the stacked matmul RHS
    H, W = hw_shape
    HW = H * W
    C = x_ref.shape[2]
    s_halo = (d_tile + 2) * HW
    s_tile = d_tile * HW
    t_idx = pl.program_id(1)

    # ---- GroupNorm affine (stats precomputed) + LeakyReLU, all f32 --------
    x = x_ref[0, 0]                                  # (C, s_halo)
    y = x * scale_ref[0] + bias_ref[0]               # single FMA per element
    y = jnp.where(y >= 0, y, negative_slope * y)

    # ---- zero halo planes that fall outside the volume ---------------------
    # (conv zero-padding along D applies to the *normalized* activations).
    flat = jax.lax.broadcasted_iota(jnp.int32, (1, s_halo), 1)
    d_src = t_idx * d_tile + flat // HW - 1          # global depth per plane
    y = jnp.where((d_src >= 0) & (d_src < depth), y, 0.0)

    # ---- in-kernel separable h/w boundary masks (iota + compares) ----------
    hh = (flat // W) % H
    ww = flat % W
    h_ok = (hh >= 1, None, hh <= H - 2)              # kh = 0, 1, 2
    w_ok = (ww >= 1, None, ww <= W - 2)              # kw = 0, 1, 2

    # ---- build the stacked (27*C, s_tile) RHS ------------------------------
    # 9 lane-rolls (XLU) of the halo'd activations; each is reused for the 3
    # kd values via a static plane slice (lane-aligned when H*W % 128 == 0).
    # Any roll wrap-around lands only on positions zeroed by the h/w masks.
    for kh in range(3):
        for kw in range(3):
            off = (kh - 1) * W + (kw - 1)
            r = y if off == 0 else pltpu.roll(y, shift=(-off) % s_halo, axis=1)
            m = h_ok[kh]
            if w_ok[kw] is not None:
                m = w_ok[kw] if m is None else (m & w_ok[kw])
            if m is not None:
                r = jnp.where(m, r, 0.0)
            r = r.astype(conv_dtype)
            for kd in range(3):
                tap = kd * 9 + kh * 3 + kw
                rhs_ref[tap * C:(tap + 1) * C, :] = (
                    r[:, kd * HW: kd * HW + s_tile])

    # ---- ONE MXU matmul over the full 27*Cin contraction, f32 accumulate ---
    o_ref[0] = jnp.dot(w_ref[...], rhs_ref[...],
                       preferred_element_type=jnp.float32).astype(o_ref.dtype)


# ---------------------------------------------------------------------------
# Wrapper
# ---------------------------------------------------------------------------
def _pick_d_tile(C, D, HW, budget_bytes=4 << 20):
    """Largest depth tile dividing D with lane-dense blocks under a VMEM budget."""
    cands = [td for td in range(1, D + 1)
             if D % td == 0 and (td == D or (td * HW) % 128 == 0)]
    fitting = [td for td in cands if C * (td + 2) * HW * 4 <= budget_bytes]
    return max(fitting) if fitting else min(cands)


def residual_inner(x, gamma, beta, weight, *, groups, negative_slope=0.01,
                   eps=1e-5, d_tile=None, use_bf16_matmul=None,
                   vmem_limit_bytes=None):
    """ResidualInner forward: Conv3d(LeakyReLU(GroupNorm(x))), bias-free conv.

    x: (N, C, D, H, W) f32; weight: (C, C, 3, 3, 3) (Conv3d OIDHW);
    gamma / beta: (C,) GroupNorm affine.
    """
    N, C, D, H, W = x.shape
    assert C % groups == 0
    assert weight.shape == (C, C, 3, 3, 3)
    HW = H * W
    S = D * HW
    cg = C // groups

    if use_bf16_matmul is None:
        use_bf16_matmul = C >= 8
    conv_dtype = jnp.bfloat16 if use_bf16_matmul else jnp.float32

    if d_tile is None:
        d_tile = _pick_d_tile(C, D, HW)
    assert D % d_tile == 0, "d_tile must divide D"
    n_tiles = D // d_tile
    assert n_tiles == 1 or (d_tile * HW) % 128 == 0, (
        "d_tile * H * W must be a multiple of 128 for lane-dense blocks")
    s_tile = d_tile * HW
    s_halo = (d_tile + 2) * HW

    x_flat = x.astype(jnp.float32).reshape(N, C, S)

    # ---- Pass 1: per-channel sum / sum-of-squares over the full volume -----
    s1, s2 = pl.pallas_call(
        _group_stats_kernel,
        out_shape=(jax.ShapeDtypeStruct((N, C, 1), jnp.float32),
                   jax.ShapeDtypeStruct((N, C, 1), jnp.float32)),
        grid_spec=pltpu.PrefetchScalarGridSpec(
            num_scalar_prefetch=0,
            grid=(N, n_tiles),
            in_specs=[pl.BlockSpec((1, C, s_tile), lambda n, t: (n, 0, t))],
            out_specs=(pl.BlockSpec((1, C, 1), lambda n, t: (n, 0, 0)),
                       pl.BlockSpec((1, C, 1), lambda n, t: (n, 0, 0))),
        ),
        compiler_params=pltpu.CompilerParams(
            dimension_semantics=("parallel", "arbitrary"),
            vmem_limit_bytes=vmem_limit_bytes),
    )(x_flat)

    # Finalize per-(n, group) stats and fold the affine into per-channel
    # (scale, bias).  A few hundred scalars -> plain JAX.
    cnt = float(cg * S)
    s1g = s1[..., 0].reshape(N, groups, cg).sum(axis=2)
    s2g = s2[..., 0].reshape(N, groups, cg).sum(axis=2)
    mean = s1g / cnt
    var = jnp.maximum(s2g / cnt - mean * mean, 0.0)   # clamp one-pass variance
    inv = jax.lax.rsqrt(var + eps)
    mean_c = jnp.repeat(mean, cg, axis=1)             # (N, C)
    inv_c = jnp.repeat(inv, cg, axis=1)               # (N, C)
    scale_c = gamma.astype(jnp.float32)[None, :] * inv_c
    bias_c = beta.astype(jnp.float32)[None, :] - mean_c * scale_c
    scale_arr = scale_c.reshape(N, C, 1)
    bias_arr = bias_c.reshape(N, C, 1)

    # ---- Pass 2 inputs: halo'd depth tiles + stacked conv weights ----------
    x_pad = jnp.pad(x_flat.reshape(N, C, D, HW),
                    ((0, 0), (0, 0), (1, 1), (0, 0)))          # (N, C, D+2, HW)
    x_tiles = jnp.stack(
        [x_pad[:, :, t * d_tile: t * d_tile + d_tile + 2, :]
         for t in range(n_tiles)], axis=1)                     # (N, nT, C, d_tile+2, HW)
    x_tiles = x_tiles.reshape(N, n_tiles, C, s_halo)

    # (Cout, 27*Cin), tap-major so column index = ((kd*3+kh)*3+kw)*Cin + ci.
    w2 = jnp.transpose(weight.astype(jnp.float32),
                       (0, 2, 3, 4, 1)).reshape(C, 27 * C).astype(conv_dtype)

    kernel = functools.partial(
        _norm_conv_kernel, negative_slope=negative_slope, hw_shape=(H, W),
        d_tile=d_tile, depth=D, conv_dtype=conv_dtype)

    out = pl.pallas_call(
        kernel,
        out_shape=jax.ShapeDtypeStruct((N, C, S), jnp.float32),
        grid_spec=pltpu.PrefetchScalarGridSpec(
            num_scalar_prefetch=0,
            grid=(N, n_tiles),
            in_specs=[
                pl.BlockSpec((1, 1, C, s_halo), lambda n, t: (n, t, 0, 0)),
                pl.BlockSpec((1, C, 1), lambda n, t: (n, 0, 0)),     # scale
                pl.BlockSpec((1, C, 1), lambda n, t: (n, 0, 0)),     # bias
                pl.BlockSpec((C, 27 * C), lambda n, t: (0, 0)),      # weights
            ],
            out_specs=pl.BlockSpec((1, C, s_tile), lambda n, t: (n, 0, t)),
            scratch_shapes=[pltpu.VMEM((27 * C, s_tile), conv_dtype)],
        ),
        # Both grid axes are fully independent (stats precomputed), so both
        # are "parallel": v7x's 2 TensorCores split spatial tiles even at N=1.
        # Raise vmem_limit_bytes when choosing large tiles (v5e scoped default
        # is only 16 MiB; v7x physical VMEM is 64 MiB).
        compiler_params=pltpu.CompilerParams(
            dimension_semantics=("parallel", "parallel"),
            vmem_limit_bytes=vmem_limit_bytes),
    )(x_tiles, scale_arr, bias_arr, w2)

    return out.reshape(N, C, D, H, W)


# ---------------------------------------------------------------------------
# Pure-JAX reference (matches the PyTorch module semantics).
# ---------------------------------------------------------------------------
def residual_inner_reference(x, gamma, beta, weight, *, groups,
                             negative_slope=0.01, eps=1e-5):
    N, C, D, H, W = x.shape
    cg = C // groups
    xg = x.reshape(N, groups, cg, D, H, W)
    mean = xg.mean(axis=(2, 3, 4, 5), keepdims=True)
    var = ((xg - mean) ** 2).mean(axis=(2, 3, 4, 5), keepdims=True)
    xn = ((xg - mean) / jnp.sqrt(var + eps)).reshape(N, C, D, H, W)
    y = xn * gamma.reshape(1, C, 1, 1, 1) + beta.reshape(1, C, 1, 1, 1)
    y = jnp.where(y >= 0, y, negative_slope * y)
    return jax.lax.conv_general_dilated(
        y, weight, window_strides=(1, 1, 1),
        padding=[(1, 1), (1, 1), (1, 1)],
        dimension_numbers=('NCDHW', 'OIDHW', 'NCDHW'),
        precision=jax.lax.Precision.HIGHEST)


if __name__ == "__main__":
    key = jax.random.PRNGKey(0)

    # --- Case 1: tiny channel count, exact f32 MXU path, 4 depth tiles -----
    N, C, D, H, W = 2, 4, 8, 16, 16
    groups = 2
    k1, k2, key = jax.random.split(key, 3)
    x = jax.random.normal(k1, (N, C, D, H, W), dtype=jnp.float32)
    weight = 0.1 * jax.random.normal(k2, (C, C, 3, 3, 3), dtype=jnp.float32)
    gamma = 1.0 + 0.1 * jnp.arange(C, dtype=jnp.float32)
    beta = 0.05 * jnp.arange(C, dtype=jnp.float32)

    out = jax.block_until_ready(
        residual_inner(x, gamma, beta, weight, groups=groups, d_tile=2))
    ref = residual_inner_reference(x, gamma, beta, weight, groups=groups)
    np.testing.assert_allclose(np.asarray(out), np.asarray(ref),
                               rtol=1e-3, atol=1e-3)

    # --- Case 2: realistic channel count, bf16 MXU operands, 2 depth tiles --
    N, C, D, H, W = 1, 32, 8, 16, 16
    groups = 4
    k1, k2, key = jax.random.split(key, 3)
    x = jax.random.normal(k1, (N, C, D, H, W), dtype=jnp.float32)
    weight = 0.1 * jax.random.normal(k2, (C, C, 3, 3, 3), dtype=jnp.float32)
    gamma = 1.0 + 0.01 * jnp.arange(C, dtype=jnp.float32)
    beta = 0.01 * jnp.arange(C, dtype=jnp.float32)

    out = jax.block_until_ready(
        residual_inner(x, gamma, beta, weight, groups=groups, d_tile=4))
    ref = residual_inner_reference(x, gamma, beta, weight, groups=groups)
    # bf16 MXU operands (f32 accumulate) -> loosened tolerance, per review.
    np.testing.assert_allclose(np.asarray(out), np.asarray(ref),
                               rtol=5e-2, atol=8e-2)

    print("KERNEL_OK")
</pallas_src>

<mosaic_0001>
module attributes {stable_mosaic.version = 11 : i64} {
  func.func @_group_stats_kernel(%arg0: i32, %arg1: i32, %arg2: memref<1x4x512xf32, #tpu.memory_space<vmem>>, %arg3: memref<1x4x1xf32, #tpu.memory_space<vmem>>, %arg4: memref<1x4x1xf32, #tpu.memory_space<vmem>>) attributes {dimension_semantics = [#tpu.dimension_semantics<parallel>, #tpu.dimension_semantics<arbitrary>], iteration_bounds = array<i64: 2, 4>, scalar_prefetch = 0 : i64, scratch_operands = 0 : i64, tpu.core_type = #tpu.core_type<tc>, window_params = [{transform_indices = @transform_0, window_bounds = array<i64: 1, 4, 512>}, {transform_indices = @transform_1, window_bounds = array<i64: 1, 4, 1>}, {transform_indices = @transform_2, window_bounds = array<i64: 1, 4, 1>}]} {
    %c0 = arith.constant 0 : index
    %c0_0 = arith.constant 0 : index
    %c0_1 = arith.constant 0 : index
    %0 = vector.load %arg2[%c0, %c0_0, %c0_1] : memref<1x4x512xf32, #tpu.memory_space<vmem>>, vector<1x4x512xf32>
    %1 = vector.shape_cast %0 : vector<1x4x512xf32> to vector<4x512xf32>
    %cst = arith.constant dense<0.000000e+00> : vector<4xf32>
    %2 = vector.multi_reduction <add>, %1, %cst [1] : vector<4x512xf32> to vector<4xf32>
    %3 = vector.shape_cast %2 : vector<4xf32> to vector<4x1xf32>
    %4 = arith.mulf %1, %1 : vector<4x512xf32>
    %cst_2 = arith.constant dense<0.000000e+00> : vector<4xf32>
    %5 = vector.multi_reduction <add>, %4, %cst_2 [1] : vector<4x512xf32> to vector<4xf32>
    %6 = vector.shape_cast %5 : vector<4xf32> to vector<4x1xf32>
    %c0_i32 = arith.constant 0 : i32
    %7 = arith.cmpi eq, %arg1, %c0_i32 : i32
    %8 = arith.extui %7 : i1 to i32
    %c0_i32_3 = arith.constant 0 : i32
    %9 = arith.cmpi ne, %8, %c0_i32_3 : i32
    scf.if %9 {
      %c0_6 = arith.constant 0 : index
      %c0_7 = arith.constant 0 : index
      %c0_8 = arith.constant 0 : index
      %13 = vector.load %arg3[%c0_6, %c0_7, %c0_8] : memref<1x4x1xf32, #tpu.memory_space<vmem>>, vector<1x4x1xf32>
      %14 = vector.shape_cast %13 : vector<1x4x1xf32> to vector<4x1xf32>
      %15 = vector.shape_cast %3 : vector<4x1xf32> to vector<1x4x1xf32>
      tpu.vector_store %arg3[%c0_6, %c0_7, %c0_8], %15 {strides = array<i32>} : memref<1x4x1xf32, #tpu.memory_space<vmem>>, vector<1x4x1xf32>,
      %c0_9 = arith.constant 0 : index
      %c0_10 = arith.constant 0 : index
      %c0_11 = arith.constant 0 : index
      %16 = vector.load %arg4[%c0_9, %c0_10, %c0_11] : memref<1x4x1xf32, #tpu.memory_space<vmem>>, vector<1x4x1xf32>
      %17 = vector.shape_cast %16 : vector<1x4x1xf32> to vector<4x1xf32>
      %18 = vector.shape_cast %6 : vector<4x1xf32> to vector<1x4x1xf32>
      tpu.vector_store %arg4[%c0_9, %c0_10, %c0_11], %18 {strides = array<i32>} : memref<1x4x1xf32, #tpu.memory_space<vmem>>, vector<1x4x1xf32>,
    } else {
    }
    %c0_i32_4 = arith.constant 0 : i32
    %10 = arith.cmpi ne, %arg1, %c0_i32_4 : i32
    %11 = arith.extui %10 : i1 to i32
    %c0_i32_5 = arith.constant 0 : i32
    %12 = arith.cmpi ne, %11, %c0_i32_5 : i32
    scf.if %12 {
      %c0_6 = arith.constant 0 : index
      %c0_7 = arith.constant 0 : index
      %c0_8 = arith.constant 0 : index
      %13 = vector.load %arg3[%c0_6, %c0_7, %c0_8] : memref<1x4x1xf32, #tpu.memory_space<vmem>>, vector<1x4x1xf32>
      %14 = vector.shape_cast %13 : vector<1x4x1xf32> to vector<4x1xf32>
      %15 = arith.addf %14, %3 : vector<4x1xf32>
      %c0_9 = arith.constant 0 : index
      %c0_10 = arith.constant 0 : index
      %c0_11 = arith.constant 0 : index
      %16 = vector.load %arg3[%c0_9, %c0_10, %c0_11] : memref<1x4x1xf32, #tpu.memory_space<vmem>>, vector<1x4x1xf32>
      %17 = vector.shape_cast %16 : vector<1x4x1xf32> to vector<4x1xf32>
      %18 = vector.shape_cast %15 : vector<4x1xf32> to vector<1x4x1xf32>
      tpu.vector_store %arg3[%c0_9, %c0_10, %c0_11], %18 {strides = array<i32>} : memref<1x4x1xf32, #tpu.memory_space<vmem>>, vector<1x4x1xf32>,
      %c0_12 = arith.constant 0 : index
      %c0_13 = arith.constant 0 : index
      %c0_14 = arith.constant 0 : index
      %19 = vector.load %arg4[%c0_12, %c0_13, %c0_14] : memref<1x4x1xf32, #tpu.memory_space<vmem>>, vector<1x4x1xf32>
      %20 = vector.shape_cast %19 : vector<1x4x1xf32> to vector<4x1xf32>
      %21 = arith.addf %20, %6 : vector<4x1xf32>
      %c0_15 = arith.constant 0 : index
      %c0_16 = arith.constant 0 : index
      %c0_17 = arith.constant 0 : index
      %22 = vector.load %arg4[%c0_15, %c0_16, %c0_17] : memref<1x4x1xf32, #tpu.memory_space<vmem>>, vector<1x4x1xf32>
      %23 = vector.shape_cast %22 : vector<1x4x1xf32> to vector<4x1xf32>
      %24 = vector.shape_cast %21 : vector<4x1xf32> to vector<1x4x1xf32>
      tpu.vector_store %arg4[%c0_15, %c0_16, %c0_17], %24 {strides = array<i32>} : memref<1x4x1xf32, #tpu.memory_space<vmem>>, vector<1x4x1xf32>,
    } else {
    }
    return
  }
  func.func @transform_0(%arg0: i32, %arg1: i32) -> (i32, i32, i32) {
    %c0_i32 = arith.constant 0 : i32
    %c0_i32_0 = arith.constant 0 : i32
    return %arg0, %c0_i32, %arg1 : i32, i32, i32
  }
  func.func @transform_1(%arg0: i32, %arg1: i32) -> (i32, i32, i32) {
    %c0_i32 = arith.constant 0 : i32
    %c0_i32_0 = arith.constant 0 : i32
    %c0_i32_1 = arith.constant 0 : i32
    return %arg0, %c0_i32, %c0_i32_0 : i32, i32, i32
  }
  func.func @transform_2(%arg0: i32, %arg1: i32) -> (i32, i32, i32) {
    %c0_i32 = arith.constant 0 : i32
    %c0_i32_0 = arith.constant 0 : i32
    %c0_i32_1 = arith.constant 0 : i32
    return %arg0, %c0_i32, %c0_i32_0 : i32, i32, i32
  }
}

</mosaic_0001>

<llo_original>
// kernel: tpu_custom_call.1
$region0: #{tpu_custom_call.1}
  #allocation0 [shape = 'u32[]', space=smem, size = 0x4, offset = 0x4, fixed_abs, tag = 'smem constant byte address 0x4 - core index']
  #allocation1 [shape = 'u32[144,128]{1,0:T(1,128)}', space=vmem, size = 0x12000, scoped, tag = 'internal scratch']
  %s0 = inlined_call_operand.hbm [shape: f32[2,4,2048], index: 0, kind: input, shape index: {}]
  %s1 = inlined_call_operand.vmem [shape: f32[2,4,1], index: 1, kind: output, shape index: {0}]
  %s2 = inlined_call_operand.vmem [shape: f32[2,4,1], index: 2, kind: output, shape index: {1}]
  %3 = xla_tuple %s1, %s2
  %s4 = sld [smem:[#allocation0]]
  $region57: #{tpu_custom_call.1} parent=0
    _
  %s6 = ssub.s32 1, %s4
  %s7 = scalar_select 0, %s6, %s4
  $region1: #{tpu_custom_call.1} parent=0
    #allocation2 [shape = 'u8[16384]{0}', space=vmem, size = 0x4000, scoped, tag = 'input window, operand 0']
    #allocation3 [shape = 's32[2]{0}', space=sflag, size = 0x8, scoped, tag = 'scoped memory for tpu_custom_call.1']
    %8 = vsyncpa [#allocation3], 0
    %s9 = scalar_lea.sflag [#allocation3], 1
    %10 = vsyncpa %s9, 0
    loop: start=0, step=1, limit=10
    $region2: #{tpu_custom_call.1} parent=1 // loop_pre_header
      _
    $region3: #{tpu_custom_call.1} parent=1 // loop_header
      %s12 = sphi 0, %s16
      %p13 = scmp.ge.s32.totalorder %s12, 10
      %s19 = sphi 0, %s31
      %s20 = sphi 0, %s27
      %s21 = sphi 0, %s19
      %s22 = sphi 0, %s20
      %s23 = sphi 0, %s21
      %s24 = sphi 0, %s22
      %s36 = sphi 0, %s38
      %s39 = sphi 0, %s36
      %s40 = sphi 0, %s39
      %s56 = sphi 0, %s40
      %s62 = sphi 0, %s64
      %s65 = sphi 0, %s62
      %s66 = sphi 0, %s65
      %s82 = sphi 0, %s66
      %s88 = sphi 0, %s90
      %s91 = sphi 0, %s88
      %s92 = sphi 0, %s91
      %s108 = sphi 0, %s92
    $region4: #{tpu_custom_call.1} parent=1 // loop_header_branch
      %15 = sbr.rel (%p13) target = $region8
    $region5: #{tpu_custom_call.1} parent=1 // loop_body
      %s17 = ssub.s32 %s12, 1
      %s18 = ssub.s32 %s12, 2
      %s25 = sadd.s32 1, %s20
      %p26 = scmp.ge.s32.totalorder %s25, 4
      %s27 = scalar_select %p26, 0, %s25
      %s28 = sadd.s32 1, %s19
      %s29 = scalar_select %p26, %s28, %s19
      %p30 = scmp.ge.s32.totalorder %s29, 2
      %s31 = scalar_select %p30, 0, %s29
      %s32 = ssub.s32 %s19, %s31
      %s33 = ssub.s32 %s20, %s27
      %s34 = sor.u32 %s32, %s33
      %p35 = scmp.eq.s32.totalorder %s34, 0
      %s37 = sadd.s32 %s36, 1
      %s38 = scalar_select %p35, %s36, %s37
      %p41 = pneg %p35
      %p42 = scmp.eq.s32.totalorder %s12, 7
      %p43 = por %p41, %p42
      %p44 = scmp.ne.s32.totalorder %s36, %s39
      %p45 = scmp.eq.s32.totalorder %s12, 0
      %p46 = por %p44, %p45
      %p47 = scmp.ne.s32.totalorder %s36, %s39
      %p48 = scmp.eq.s32.totalorder %s17, 7
      %p49 = por %p47, %p48
      %p50 = scmp.ne.s32.totalorder %s39, %s40
      %p51 = scmp.eq.s32.totalorder %s17, 0
      %p52 = por %p50, %p51
      %p53 = scmp.ne.s32.totalorder %s39, %s40
      %p54 = scmp.eq.s32.totalorder %s18, 7
      %p55 = por %p53, %p54
      %p57 = scmp.ne.s32.totalorder %s40, %s56
      %p58 = scmp.eq.s32.totalorder %s18, 0
      %p59 = por %p57, %p58
      %s60 = ssub.s32 %s19, %s31
      %p61 = scmp.eq.s32.totalorder %s60, 0
      %s63 = sadd.s32 %s62, 1
      %s64 = scalar_select %p61, %s62, %s63
      %p67 = pneg %p61
      %p68 = scmp.eq.s32.totalorder %s12, 7
      %p69 = por %p67, %p68
      %p70 = scmp.ne.s32.totalorder %s62, %s65
      %p71 = scmp.eq.s32.totalorder %s12, 0
      %p72 = por %p70, %p71
      %p73 = scmp.ne.s32.totalorder %s62, %s65
      %p74 = scmp.eq.s32.totalorder %s17, 7
      %p75 = por %p73, %p74
      %p76 = scmp.ne.s32.totalorder %s65, %s66
      %p77 = scmp.eq.s32.totalorder %s17, 0
      %p78 = por %p76, %p77
      %p79 = scmp.ne.s32.totalorder %s65, %s66
      %p80 = scmp.eq.s32.totalorder %s18, 7
      %p81 = por %p79, %p80
      %p83 = scmp.ne.s32.totalorder %s66, %s82
      %p84 = scmp.eq.s32.totalorder %s18, 0
      %p85 = por %p83, %p84
      %s86 = ssub.s32 %s19, %s31
      %p87 = scmp.eq.s32.totalorder %s86, 0
      %s89 = sadd.s32 %s88, 1
      %s90 = scalar_select %p87, %s88, %s89
      %p93 = pneg %p87
      %p94 = scmp.eq.s32.totalorder %s12, 7
      %p95 = por %p93, %p94
      %p96 = scmp.ne.s32.totalorder %s88, %s91
      %p97 = scmp.eq.s32.totalorder %s12, 0
      %p98 = por %p96, %p97
      %p99 = scmp.ne.s32.totalorder %s88, %s91
      %p100 = scmp.eq.s32.totalorder %s17, 7
      %p101 = por %p99, %p100
      %p102 = scmp.ne.s32.totalorder %s91, %s92
      %p103 = scmp.eq.s32.totalorder %s17, 0
      %p104 = por %p102, %p103
      %p105 = scmp.ne.s32.totalorder %s91, %s92
      %p106 = scmp.eq.s32.totalorder %s18, 7
      %p107 = por %p105, %p106
      %p109 = scmp.ne.s32.totalorder %s92, %s108
      %p110 = scmp.eq.s32.totalorder %s18, 0
      %p111 = por %p109, %p110
      %p112 = scmp.le.s32.totalorder 1, %s12
      %p113 = scmp.lt.s32.totalorder %s12, 9
      %p114 = pnand %p112, %p113
      %p115 = pneg %p114
      // Predicated region
      $region9: #{tpu_custom_call.1} parent=5 // pred_check
        _
      $region10: #{tpu_custom_call.1} parent=5 // pred_check_branch
        %117 = sbr.rel (%p114) target = $region12
      $region11: #{tpu_custom_call.1} parent=5 // pred_region
        %s118 = ssub.s32 %s12, 1
      $region12: #{tpu_custom_call.1} parent=5 // pred_fallthru
        _
      %p119 = scmp.lt.s32.totalorder %s12, 8
      // Predicated region
      $region13: #{tpu_custom_call.1} parent=5 // pred_check
        %p120 = pneg %p119
      $region14: #{tpu_custom_call.1} parent=5 // pred_check_branch
        %122 = sbr.rel (%p120) target = $region16
      $region15: #{tpu_custom_call.1} parent=5 // pred_region
        // Predicated region
        $region17: #{tpu_custom_call.1} parent=15 // pred_check
          %p123 = pneg %p46
        $region18: #{tpu_custom_call.1} parent=15 // pred_check_branch
          %125 = sbr.rel (%p123) target = $region20
        $region19: #{tpu_custom_call.1} parent=15 // pred_region
          %s126 = sand.u32 %s36, 1
          %s127 = scalar_lea.sflag [#allocation3], %s126
          %s128 = sand.u32 %s36, 1
          %s129 = smul.addr %s128, 16
          %s130 = scalar_lea.vmem [#allocation2], %s129
          %s131 = smul.u32 4, %s20
          %s133 = ssub.s32 256, 256
          %134 = vsyncadd %s127, %s133
          %s135 = smul.addr %s19, 16
          %s136 = sadd.s32 %s131, %s135
          %s137 = smul.addr %s136, 64
          %s138 = scalar_lea.hbm %s0, %s137
          %s140 = sshll.u32 %s130, 4
          %s141 = int_to_ptr.vmem [resolvable:$true] %s140
          %143 = dma.hbm_to_vmem [thread:$0]  %s138, 256, %s141, %s127
        $region20: #{tpu_custom_call.1} parent=15 // pred_fallthru
          _
      $region16: #{tpu_custom_call.1} parent=5 // pred_fallthru
        _
      %p144 = scmp.le.s32.totalorder 1, %s12
      %p145 = scmp.lt.s32.totalorder %s12, 9
      %p146 = pnand %p144, %p145
      %p147 = pneg %p146
      // Predicated region
      $region21: #{tpu_custom_call.1} parent=5 // pred_check
        _
      $region22: #{tpu_custom_call.1} parent=5 // pred_check_branch
        %149 = sbr.rel (%p146) target = $region24
      $region23: #{tpu_custom_call.1} parent=5 // pred_region
        %s150 = ssub.s32 %s12, 1
        %s151 = sand.u32 %s39, 1
        %s152 = scalar_lea.sflag [#allocation3], %s151
        %s153 = sand.u32 %s39, 1
        %s154 = smul.addr %s153, 16
        %s155 = scalar_lea.vmem [#allocation2], %s154
        // Predicated region
        $region25: #{tpu_custom_call.1} parent=23 // pred_check
          %p156 = pneg %p52
        $region26: #{tpu_custom_call.1} parent=23 // pred_check_branch
          %158 = sbr.rel (%p156) target = $region28
        $region27: #{tpu_custom_call.1} parent=23 // pred_region
          %159 = dma.done %s152, 256
        $region28: #{tpu_custom_call.1} parent=23 // pred_fallthru
          _
        %s160 = sand.u32 %s39, 1
        %s161 = scalar_lea.sflag [#allocation3], %s160
        %s162 = sand.u32 %s39, 1
        %s163 = smul.addr %s162, 16
        %s164 = scalar_lea.vmem [#allocation2], %s163
        %p165 = pneg %p52
        %p166 = pneg %p49
        %p167 = pneg %p78
        %p168 = pneg %p75
        %p169 = scmp.lt.s32.totalorder %s21, 1
        %s170 = scalar_select %p169, %s21, 1
        %s171 = smul.addr %s170, 4
        %s172 = scalar_lea.vmem %s1, %s171
        %p173 = pneg %p104
        %p174 = pneg %p101
        %p175 = scmp.lt.s32.totalorder %s21, 1
        %s176 = scalar_select %p175, %s21, 1
        %s177 = smul.addr %s176, 4
        %s178 = scalar_lea.vmem %s2, %s177
        %s179 = smul.u32 4, %s22
        %p180 = scmp.lt.s32.totalorder %s21, 1
        %s181 = scalar_select %p180, %s21, 1
        %s182 = smul.addr %s181, 4
        %s183 = scalar_lea.vmem %s1, %s182
        %p184 = scmp.lt.s32.totalorder %s21, 1
        %s185 = scalar_select %p184, %s21, 1
        %s186 = smul.addr %s185, 4
        %s187 = scalar_lea.vmem %s2, %s186
        %v188 = vld [vmem:[%s155] sm:$0xff]
        %v189 = vld [vmem:[%s155 + $0x8] sm:$0xff]
        %v192 = vcombine.high %v188, %v188
        %v193 = vcombine.high %v189, %v189
        %vm196 = vcmask 1043456
        %v197 = vsel %vm196, %v188, 0.0
        %v198 = vsel %vm196, %v192, 0.0
        %v199 = vadd.f32 %v197, %v198
        %v200 = vsel %vm196, %v189, 0.0
        %v201 = vadd.f32 %v199, %v200
        %v202 = vsel %vm196, %v193, 0.0
        %v203 = vadd.f32 %v201, %v202
        %204 = vadd.xlane.f32.xlu0 %v203
        %v205 = vpop.xlane.xlu0 %204
        %v206 = vmul.f32 %v188, %v188
        %v207 = vmul.f32 %v189, %v189
        %v210 = vcombine.high %v206, %v206
        %v211 = vcombine.high %v207, %v207
        %v214 = vsel %vm196, %v206, 0.0
        %v215 = vsel %vm196, %v210, 0.0
        %v216 = vadd.f32 %v214, %v215
        %v217 = vsel %vm196, %v207, 0.0
        %v218 = vadd.f32 %v216, %v217
        %v219 = vsel %vm196, %v211, 0.0
        %v220 = vadd.f32 %v218, %v219
        %221 = vadd.xlane.f32.xlu0 %v220
        %v222 = vpop.xlane.xlu0 %221
        %p223 = scmp.eq.s32.totalorder %s22, 0
        // Predicated region
        $region29: #{tpu_custom_call.1} parent=23 // pred_check
          %p224 = pneg %p223
        $region30: #{tpu_custom_call.1} parent=23 // pred_check_branch
          %226 = sbr.rel (%p224) target = $region32
        $region31: #{tpu_custom_call.1} parent=23 // pred_region
          %vm227 = vcmask 3072
          %228 = vst.msk [vmem:[%s183] sm:$0xf] %vm227, %v205
          %229 = vst.msk [vmem:[%s187] sm:$0xf] %vm227, %v222
        $region32: #{tpu_custom_call.1} parent=23 // pred_fallthru
          _
        %p230 = scmp.ne.s32.totalorder %s22, 0
        // Predicated region
        $region33: #{tpu_custom_call.1} parent=23 // pred_check
          %p231 = pneg %p230
        $region34: #{tpu_custom_call.1} parent=23 // pred_check_branch
          %233 = sbr.rel (%p231) target = $region36
        $region35: #{tpu_custom_call.1} parent=23 // pred_region
          %v234 = vld [vmem:[%s183] sm:$0xf]
          %v235 = vadd.f32 %v234, %v205
          %vm236 = vcmask 3072
          %237 = vst.msk [vmem:[%s183] sm:$0xf] %vm236, %v235
          %v238 = vld [vmem:[%s187] sm:$0xf]
          %v239 = vadd.f32 %v238, %v222
          %240 = vst.msk [vmem:[%s187] sm:$0xf] %vm236, %v239
        $region36: #{tpu_custom_call.1} parent=23 // pred_fallthru
          _
        %p241 = scmp.lt.s32.totalorder %s21, 1
        %s242 = scalar_select %p241, %s21, 1
        %s243 = smul.addr %s242, 4
        %s244 = scalar_lea.vmem %s1, %s243
        %p245 = scmp.lt.s32.totalorder %s21, 1
        %s246 = scalar_select %p245, %s21, 1
        %s247 = smul.addr %s246, 4
        %s248 = scalar_lea.vmem %s2, %s247
        // Predicated region
        $region37: #{tpu_custom_call.1} parent=23 // pred_check
          %p249 = pneg %p75
        $region38: #{tpu_custom_call.1} parent=23 // pred_check_branch
          %251 = sbr.rel (%p249) target = $region40
        $region39: #{tpu_custom_call.1} parent=23 // pred_region
          _
        $region40: #{tpu_custom_call.1} parent=23 // pred_fallthru
          _
        // Predicated region
        $region41: #{tpu_custom_call.1} parent=23 // pred_check
          %p252 = pneg %p101
        $region42: #{tpu_custom_call.1} parent=23 // pred_check_branch
          %254 = sbr.rel (%p252) target = $region44
        $region43: #{tpu_custom_call.1} parent=23 // pred_region
          _
        $region44: #{tpu_custom_call.1} parent=23 // pred_fallthru
          _
      $region24: #{tpu_custom_call.1} parent=5 // pred_fallthru
        _
      %p255 = scmp.le.s32.totalorder 2, %s12
      // Predicated region
      $region45: #{tpu_custom_call.1} parent=5 // pred_check
        %p256 = pneg %p255
      $region46: #{tpu_custom_call.1} parent=5 // pred_check_branch
        %258 = sbr.rel (%p256) target = $region48
      $region47: #{tpu_custom_call.1} parent=5 // pred_region
        %s259 = ssub.s32 %s12, 2
        // Predicated region
        $region49: #{tpu_custom_call.1} parent=47 // pred_check
          %p260 = pneg %p81
        $region50: #{tpu_custom_call.1} parent=47 // pred_check_branch
          %262 = sbr.rel (%p260) target = $region52
        $region51: #{tpu_custom_call.1} parent=47 // pred_region
          %p263 = scmp.lt.s32.totalorder %s23, 1
          %s264 = scalar_select %p263, %s23, 1
          %s265 = smul.addr %s264, 4
          %s266 = scalar_lea.vmem %s1, %s265
        $region52: #{tpu_custom_call.1} parent=47 // pred_fallthru
          _
        // Predicated region
        $region53: #{tpu_custom_call.1} parent=47 // pred_check
          %p267 = pneg %p107
        $region54: #{tpu_custom_call.1} parent=47 // pred_check_branch
          %269 = sbr.rel (%p267) target = $region56
        $region55: #{tpu_custom_call.1} parent=47 // pred_region
          %p270 = scmp.lt.s32.totalorder %s23, 1
          %s271 = scalar_select %p270, %s23, 1
          %s272 = smul.addr %s271, 4
          %s273 = scalar_lea.vmem %s2, %s272
        $region56: #{tpu_custom_call.1} parent=47 // pred_fallthru
          _
      $region48: #{tpu_custom_call.1} parent=5 // pred_fallthru
        _
    $region6: #{tpu_custom_call.1} parent=1 // loop_footer
      %s16 = sadd.s32 1, %s12
    $region7: #{tpu_custom_call.1} parent=1 // loop_footer_branch
      %11 = sbr.rel target = $region3
    $region8: #{tpu_custom_call.1} parent=1 // loop_exit
      _
    %274 = vsyncpa [#allocation3], 1
    %s275 = scalar_lea.sflag [#allocation3], 1
    %276 = vsyncpa %s275, 1

</llo_original>
